<compile_context>
chip_gen: v7x
topology: tpu7x:2x2x1
jax: 0.10.0
libtpu: 0.0.40
codegen_flags: <defaults>
</compile_context>

<pallas_src>
import functools
import math

import jax
import jax.numpy as jnp
from jax import lax
from jax.experimental import pallas as pl
from jax.experimental.pallas import tpu as pltpu


def _round_up(x, n):
    return ((x + n - 1) // n) * n


def _arcface_kernel(lab_ref, emb_ref, w_ref, out_ref,
                    m_scr, l_scr, t_scr, *,
                    scale, cos_m, sin_m, block_c, num_classes, mask_classes,
                    compute_dtype):
    """One (batch_supertile, class_tile) grid step of the ArcFace loss.

    lab_ref : (TB, 1)  int32    labels
    emb_ref : (TB, E)  compute_dtype   s * L2-normalized embeddings (resident)
    w_ref   : (TC, E)  raw weight tile (normalized in-kernel)
    out_ref : (TB, 1)  f32      per-row loss (written on last class tile)
    m/l/t_scr : (TB, 1) f32     running max / running sum / target logit
    """
    ci = pl.program_id(1)
    nc = pl.num_programs(1)

    @pl.when(ci == 0)
    def _init():
        m_scr[...] = jnp.full_like(m_scr, -jnp.inf)
        l_scr[...] = jnp.zeros_like(l_scr)
        t_scr[...] = jnp.zeros_like(t_scr)

    labels = lab_ref[...]                                       # (TB, 1) int32

    # In-kernel weight L2-normalization (F.normalize semantics), then cast to
    # the MXU operand dtype.  The weight tile is read from HBM exactly once,
    # so this removes a full wrapper read+write pass over (C, E).
    w = w_ref[...].astype(jnp.float32)                          # (TC, E)
    w_norm = jnp.sqrt(jnp.sum(w * w, axis=1, keepdims=True))    # (TC, 1)
    w_inv = 1.0 / jnp.maximum(w_norm, 1e-12)
    w_n = (w * w_inv).astype(compute_dtype)

    # NT matmul on the MXU: contract the embedding (last, lane-major) dim of
    # both operands directly -- no transpose of the weight tile.  The
    # embedding block was pre-scaled by `scale`, so `scores` == s * cos(theta).
    scores = lax.dot_general(
        emb_ref[...], w_n,
        dimension_numbers=(((1,), (1,)), ((), ())),
        preferred_element_type=jnp.float32)                     # (TB, TC) f32

    off = ci * block_c
    class_ids = lax.broadcasted_iota(jnp.int32, scores.shape, 1) + off
    one_hot = class_ids == labels                               # (TB, TC) bool
    hit = (labels >= off) & (labels < off + block_c)            # (TB, 1) bool

    # Margin logit for the target column only: per-ROW clip / sqrt (no
    # full-tile clip of the cosine -- non-target logits differ by <= s*1e-7).
    cos_t = jnp.sum(jnp.where(one_hot, scores, 0.0), axis=1, keepdims=True)
    cos_t = jnp.clip(cos_t * (1.0 / scale), -1.0 + 1e-7, 1.0 - 1e-7)
    sin_t = jnp.sqrt(jnp.maximum(1.0 - cos_t * cos_t, 0.0))
    phi_t = scale * (cos_t * cos_m - sin_t * sin_m)             # (TB, 1) f32

    logits = jnp.where(one_hot, phi_t, scores)                  # (TB, TC)
    if mask_classes:
        # Undefined tail lanes of the (cdiv-grid) last class tile: mask BEFORE
        # the max/sum.  (one_hot is False there, so cos_t is already safe.)
        logits = jnp.where(class_ids < num_classes, logits, -1e30)

    # Online logsumexp update (running-max rescale).
    m_prev = m_scr[...]
    m_new = jnp.maximum(m_prev, jnp.max(logits, axis=1, keepdims=True))
    alpha = jnp.exp(m_prev - m_new)
    l_scr[...] = alpha * l_scr[...] + jnp.sum(jnp.exp(logits - m_new),
                                              axis=1, keepdims=True)
    m_scr[...] = m_new
    t_scr[...] = jnp.where(hit, phi_t, t_scr[...])

    @pl.when(ci == nc - 1)
    def _finalize():
        # per-row cross-entropy: logsumexp(logits) - logits[label]
        out_ref[...] = (jnp.log(l_scr[...]) + m_scr[...]) - t_scr[...]


def arcface_loss(embeddings, labels, weight, *, s=64.0, m=0.5,
                 compute_dtype=jnp.bfloat16, block_b=512, block_c=2048):
    """ArcFace mean cross-entropy loss.

    embeddings: (B, E) float, labels: (B,) int, weight: (C, E) float.
    compute_dtype: MXU operand / embedding streaming dtype (bf16 default;
    pass jnp.float32 for exact eval parity).  All elementwise math is f32.
    """
    B, E = embeddings.shape
    C, E2 = weight.shape
    assert E == E2

    # Normalize the embeddings once (tiny: B*E) and fold the ArcFace scale s
    # into the same multiply, so the kernel never does a full-tile s*cosine.
    # The weight is NOT touched here: it is streamed raw from HBM once and
    # normalized inside the kernel.
    emb32 = embeddings.astype(jnp.float32)
    inv = s / jnp.maximum(jnp.linalg.norm(emb32, axis=1, keepdims=True), 1e-12)
    emb_s = (emb32 * inv).astype(compute_dtype)                 # s * normalized

    labels2d = labels.astype(jnp.int32).reshape(B, 1)

    # Batch super-tile (sublane multiple of 8) resident across the class axis;
    # class tile (multiple of 128) streamed.  cdiv grid: no array padding.
    tb = min(block_b, _round_up(B, 8))
    tc = min(block_c, _round_up(C, 128))
    grid = (pl.cdiv(B, tb), pl.cdiv(C, tc))
    mask_classes = (C % tc) != 0

    # VMEM budget derived from actual tile bytes, capped by the chip's VMEM
    # (never request all of v7x's 64 MiB).
    isz = lambda dt: jnp.dtype(dt).itemsize
    vmem_needed = (
        2 * tb * E * isz(compute_dtype)       # resident embedding block (x2 bufs)
        + 2 * tc * E * isz(weight.dtype)      # double-buffered weight tile
        + 2 * tb * 4 + 2 * tb * 4             # labels + output blocks
        + 3 * tb * 4                          # (TB,1) scratch
        + 6 * tb * tc * 4                     # (TB,TC) f32 temporaries
        + (4 << 20))                          # headroom
    try:
        vmem_cap = int(getattr(pltpu.get_tpu_info(), "vmem_capacity_bytes",
                               64 << 20))
    except Exception:
        vmem_cap = 64 << 20                   # v7x worst case
    vmem_limit = int(min(max(vmem_needed, 32 << 20), int(vmem_cap * 0.9)))

    kernel = functools.partial(
        _arcface_kernel,
        scale=float(s),
        cos_m=float(math.cos(m)),
        sin_m=float(math.sin(m)),
        block_c=tc,
        num_classes=C,
        mask_classes=mask_classes,
        compute_dtype=compute_dtype,
    )

    per_row = pl.pallas_call(
        kernel,
        out_shape=jax.ShapeDtypeStruct((B, 1), jnp.float32),
        grid_spec=pltpu.PrefetchScalarGridSpec(
            num_scalar_prefetch=0,
            grid=grid,
            in_specs=[
                pl.BlockSpec((tb, 1), lambda bi, ci: (bi, 0)),   # labels
                pl.BlockSpec((tb, E), lambda bi, ci: (bi, 0)),   # s*normalized emb
                pl.BlockSpec((tc, E), lambda bi, ci: (ci, 0)),   # raw weight tile
            ],
            out_specs=pl.BlockSpec((tb, 1), lambda bi, ci: (bi, 0)),
            scratch_shapes=[
                pltpu.VMEM((tb, 1), jnp.float32),   # running max
                pltpu.VMEM((tb, 1), jnp.float32),   # running sum
                pltpu.VMEM((tb, 1), jnp.float32),   # target logit
            ],
        ),
        compiler_params=pltpu.CompilerParams(
            dimension_semantics=("parallel", "arbitrary"),
            vmem_limit_bytes=vmem_limit,
        ),
    )(labels2d, emb_s, weight)

    return jnp.mean(per_row[:B, 0])


def xavier_uniform(key, shape, dtype=jnp.float32):
    # nn.init.xavier_uniform_ on a (class_num, embedding_size) tensor.
    fan_out, fan_in = shape
    bound = math.sqrt(6.0 / (fan_in + fan_out))
    return jax.random.uniform(key, shape, dtype=dtype, minval=-bound, maxval=bound)


def _reference_loss(embeddings, labels, weight, s, m, compute_dtype=jnp.float32):
    """Pure-JAX reference with the same math as the PyTorch module."""
    class_num = weight.shape[0]
    emb_n = embeddings / jnp.maximum(
        jnp.linalg.norm(embeddings, axis=1, keepdims=True), 1e-12)
    w_n = weight / jnp.maximum(
        jnp.linalg.norm(weight, axis=1, keepdims=True), 1e-12)
    cosine = lax.dot_general(
        emb_n.astype(compute_dtype), w_n.astype(compute_dtype),
        dimension_numbers=(((1,), (1,)), ((), ())),
        preferred_element_type=jnp.float32)
    cosine = jnp.clip(cosine, -1.0 + 1e-7, 1.0 - 1e-7)
    theta = jnp.arccos(cosine)
    one_hot = jax.nn.one_hot(labels, class_num, dtype=jnp.float32)
    out = (one_hot * jnp.cos(theta + m) + (1.0 - one_hot) * cosine) * s
    return jnp.mean(jax.nn.logsumexp(out, axis=1) - jnp.sum(one_hot * out, axis=1))


if __name__ == "__main__":
    s_val, m_val = 64.0, 0.5
    key = jax.random.PRNGKey(0)
    k_emb, k_w, k_lab, k2_emb, k2_w, k2_lab = jax.random.split(key, 6)

    # --- Test 1: single class tile; f32 parity path + default bf16 path -----
    batch, embedding_size, class_num = 8, 128, 256
    embeddings = jax.random.normal(k_emb, (batch, embedding_size), jnp.float32)
    weight = xavier_uniform(k_w, (class_num, embedding_size))
    labels = jax.random.randint(k_lab, (batch,), 0, class_num, dtype=jnp.int32)

    loss_f32 = arcface_loss(embeddings, labels, weight, s=s_val, m=m_val,
                            compute_dtype=jnp.float32)
    jax.block_until_ready(loss_f32)
    ref_f32 = _reference_loss(embeddings, labels, weight, s_val, m_val)
    assert jnp.allclose(loss_f32, ref_f32, atol=1e-3, rtol=1e-4), (loss_f32, ref_f32)

    loss_bf16 = arcface_loss(embeddings, labels, weight, s=s_val, m=m_val)  # bf16 default
    jax.block_until_ready(loss_bf16)
    ref_bf16 = _reference_loss(embeddings, labels, weight, s_val, m_val,
                               compute_dtype=jnp.bfloat16)
    assert jnp.allclose(loss_bf16, ref_bf16, atol=3e-2, rtol=1e-3), (loss_bf16, ref_bf16)

    # --- Test 2: multiple class tiles, non-divisible C (last-tile masking),
    #             non-multiple-of-8 batch, online logsumexp ------------------
    batch2, class_num2 = 20, 1000            # 4 class tiles of 256, 232-row tail
    embeddings2 = jax.random.normal(k2_emb, (batch2, embedding_size), jnp.float32)
    weight2 = xavier_uniform(k2_w, (class_num2, embedding_size))
    labels2 = jax.random.randint(k2_lab, (batch2,), 0, class_num2, dtype=jnp.int32)

    loss2 = arcface_loss(embeddings2, labels2, weight2, s=s_val, m=m_val,
                         compute_dtype=jnp.float32, block_c=256)
    jax.block_until_ready(loss2)
    ref2 = _reference_loss(embeddings2, labels2, weight2, s_val, m_val)
    assert jnp.allclose(loss2, ref2, atol=1e-3, rtol=1e-4), (loss2, ref2)

    loss2_bf = arcface_loss(embeddings2, labels2, weight2, s=s_val, m=m_val,
                            block_c=256)     # bf16 default
    jax.block_until_ready(loss2_bf)
    ref2_bf = _reference_loss(embeddings2, labels2, weight2, s_val, m_val,
                              compute_dtype=jnp.bfloat16)
    assert jnp.allclose(loss2_bf, ref2_bf, atol=3e-2, rtol=1e-3), (loss2_bf, ref2_bf)

    print("KERNEL_OK")
</pallas_src>

<mosaic_0001>
module attributes {stable_mosaic.version = 11 : i64} {
  func.func @_arcface_kernel(%arg0: i32, %arg1: i32, %arg2: memref<8x1xi32, #tpu.memory_space<vmem>>, %arg3: memref<8x128xf32, #tpu.memory_space<vmem>>, %arg4: memref<256x128xf32, #tpu.memory_space<vmem>>, %arg5: memref<8x1xf32, #tpu.memory_space<vmem>>, %arg6: memref<8x1xf32, #tpu.memory_space<vmem>>, %arg7: memref<8x1xf32, #tpu.memory_space<vmem>>, %arg8: memref<8x1xf32, #tpu.memory_space<vmem>>) attributes {dimension_semantics = [#tpu.dimension_semantics<parallel>, #tpu.dimension_semantics<arbitrary>], iteration_bounds = array<i64: 1, 1>, scalar_prefetch = 0 : i64, scratch_operands = 3 : i64, tpu.core_type = #tpu.core_type<tc>, window_params = [{transform_indices = @transform_0, window_bounds = array<i64: 8, 1>}, {transform_indices = @transform_1, window_bounds = array<i64: 8, 128>}, {transform_indices = @transform_2, window_bounds = array<i64: 256, 128>}, {transform_indices = @transform_3, window_bounds = array<i64: 8, 1>}]} {
    %c0_i32 = arith.constant 0 : i32
    %0 = arith.cmpi eq, %arg1, %c0_i32 : i32
    %1 = arith.extui %0 : i1 to i32
    %c0_i32_0 = arith.constant 0 : i32
    %2 = arith.cmpi ne, %1, %c0_i32_0 : i32
    scf.if %2 {
      %cst_36 = arith.constant 0xFF800000 : f32
      %77 = vector.broadcast %cst_36 : f32 to vector<8x1xf32>
      %c0_37 = arith.constant 0 : index
      %c0_38 = arith.constant 0 : index
      %78 = vector.load %arg6[%c0_37, %c0_38] : memref<8x1xf32, #tpu.memory_space<vmem>>, vector<8x1xf32>
      tpu.vector_store %arg6[%c0_37, %c0_38], %77 {strides = array<i32>} : memref<8x1xf32, #tpu.memory_space<vmem>>, vector<8x1xf32>,
      %cst_39 = arith.constant 0.000000e+00 : f32
      %79 = vector.broadcast %cst_39 : f32 to vector<8x1xf32>
      %c0_40 = arith.constant 0 : index
      %c0_41 = arith.constant 0 : index
      %80 = vector.load %arg7[%c0_40, %c0_41] : memref<8x1xf32, #tpu.memory_space<vmem>>, vector<8x1xf32>
      tpu.vector_store %arg7[%c0_40, %c0_41], %79 {strides = array<i32>} : memref<8x1xf32, #tpu.memory_space<vmem>>, vector<8x1xf32>,
      %cst_42 = arith.constant 0.000000e+00 : f32
      %81 = vector.broadcast %cst_42 : f32 to vector<8x1xf32>
      %c0_43 = arith.constant 0 : index
      %c0_44 = arith.constant 0 : index
      %82 = vector.load %arg8[%c0_43, %c0_44] : memref<8x1xf32, #tpu.memory_space<vmem>>, vector<8x1xf32>
      tpu.vector_store %arg8[%c0_43, %c0_44], %81 {strides = array<i32>} : memref<8x1xf32, #tpu.memory_space<vmem>>, vector<8x1xf32>,
    } else {
    }
    %c0 = arith.constant 0 : index
    %c0_1 = arith.constant 0 : index
    %3 = vector.load %arg2[%c0, %c0_1] : memref<8x1xi32, #tpu.memory_space<vmem>>, vector<8x1xi32>
    %c0_2 = arith.constant 0 : index
    %c0_3 = arith.constant 0 : index
    %4 = vector.load %arg4[%c0_2, %c0_3] : memref<256x128xf32, #tpu.memory_space<vmem>>, vector<256x128xf32>
    %5 = arith.mulf %4, %4 : vector<256x128xf32>
    %cst = arith.constant dense<0.000000e+00> : vector<256xf32>
    %6 = vector.multi_reduction <add>, %5, %cst [1] : vector<256x128xf32> to vector<256xf32>
    %7 = vector.shape_cast %6 : vector<256xf32> to vector<256x1xf32>
    %8 = math.sqrt %7 : vector<256x1xf32>
    %cst_4 = arith.constant 9.99999996E-13 : f32
    %9 = vector.broadcast %cst_4 : f32 to vector<256x1xf32>
    %10 = arith.maximumf %8, %9 : vector<256x1xf32>
    %cst_5 = arith.constant 1.000000e+00 : f32
    %11 = vector.broadcast %cst_5 : f32 to vector<256x1xf32>
    %12 = arith.divf %11, %10 : vector<256x1xf32>
    %13 = vector.broadcast %12 : vector<256x1xf32> to vector<256x128xf32>
    %14 = arith.mulf %4, %13 : vector<256x128xf32>
    %c0_6 = arith.constant 0 : index
    %c0_7 = arith.constant 0 : index
    %15 = vector.load %arg3[%c0_6, %c0_7] : memref<8x128xf32, #tpu.memory_space<vmem>>, vector<8x128xf32>
    %cst_8 = arith.constant dense<0.000000e+00> : vector<8x256xf32>
    %16 = tpu.matmul %15, %14, %cst_8 {dimension_numbers = #tpu.dot_dimension_numbers<[1], [1], [0], [0], [0, 0, 1, 0], [], []>} : vector<8x128xf32>, vector<256x128xf32>, vector<8x256xf32> -> vector<8x256xf32>
    %c256_i32 = arith.constant 256 : i32
    %17 = arith.muli %arg1, %c256_i32 : i32
    %18 = tpu.iota {dimensions = array<i32: 1>} : vector<8x256xi32>
    %19 = vector.broadcast %17 : i32 to vector<8x256xi32>
    %20 = arith.addi %18, %19 : vector<8x256xi32>
    %21 = vector.broadcast %3 : vector<8x1xi32> to vector<8x256xi32>
    %22 = arith.cmpi eq, %20, %21 : vector<8x256xi32>
    %23 = vector.broadcast %17 : i32 to vector<8x1xi32>
    %24 = arith.cmpi sge, %3, %23 : vector<8x1xi32>
    %c256_i32_9 = arith.constant 256 : i32
    %25 = arith.addi %17, %c256_i32_9 : i32
    %26 = vector.broadcast %25 : i32 to vector<8x1xi32>
    %27 = arith.cmpi slt, %3, %26 : vector<8x1xi32>
    %28 = arith.andi %24, %27 : vector<8x1xi1>
    %cst_10 = arith.constant 0.000000e+00 : f32
    %29 = vector.broadcast %cst_10 : f32 to vector<8x256xf32>
    %30 = arith.select %22, %16, %29 : vector<8x256xi1>, vector<8x256xf32>
    %cst_11 = arith.constant dense<0.000000e+00> : vector<8xf32>
    %31 = vector.multi_reduction <add>, %30, %cst_11 [1] : vector<8x256xf32> to vector<8xf32>
    %32 = vector.shape_cast %31 : vector<8xf32> to vector<8x1xf32>
    %cst_12 = arith.constant 1.562500e-02 : f32
    %33 = vector.broadcast %cst_12 : f32 to vector<8x1xf32>
    %34 = arith.mulf %32, %33 : vector<8x1xf32>
    %cst_13 = arith.constant -0.99999988 : f32
    %cst_14 = arith.constant 0.99999988 : f32
    %35 = vector.broadcast %cst_13 : f32 to vector<8x1xf32>
    %36 = arith.maximumf %35, %34 : vector<8x1xf32>
    %37 = vector.broadcast %cst_14 : f32 to vector<8x1xf32>
    %38 = arith.minimumf %37, %36 : vector<8x1xf32>
    %39 = arith.mulf %38, %38 : vector<8x1xf32>
    %cst_15 = arith.constant 1.000000e+00 : f32
    %40 = vector.broadcast %cst_15 : f32 to vector<8x1xf32>
    %41 = arith.subf %40, %39 : vector<8x1xf32>
    %cst_16 = arith.constant 0.000000e+00 : f32
    %42 = vector.broadcast %cst_16 : f32 to vector<8x1xf32>
    %43 = arith.maximumf %41, %42 : vector<8x1xf32>
    %44 = math.sqrt %43 : vector<8x1xf32>
    %cst_17 = arith.constant 0.87758255 : f32
    %45 = vector.broadcast %cst_17 : f32 to vector<8x1xf32>
    %46 = arith.mulf %38, %45 : vector<8x1xf32>
    %cst_18 = arith.constant 0.47942555 : f32
    %47 = vector.broadcast %cst_18 : f32 to vector<8x1xf32>
    %48 = arith.mulf %44, %47 : vector<8x1xf32>
    %49 = arith.subf %46, %48 : vector<8x1xf32>
    %cst_19 = arith.constant 6.400000e+01 : f32
    %50 = vector.broadcast %cst_19 : f32 to vector<8x1xf32>
    %51 = arith.mulf %50, %49 : vector<8x1xf32>
    %52 = vector.shape_cast %51 : vector<8x1xf32> to vector<8x1xf32>
    %53 = vector.broadcast %52 : vector<8x1xf32> to vector<8x256xf32>
    %54 = arith.select %22, %53, %16 : vector<8x256xi1>, vector<8x256xf32>
    %c0_20 = arith.constant 0 : index
    %c0_21 = arith.constant 0 : index
    %55 = vector.load %arg6[%c0_20, %c0_21] : memref<8x1xf32, #tpu.memory_space<vmem>>, vector<8x1xf32>
    %cst_22 = arith.constant dense<0xFF800000> : vector<8xf32>
    %56 = vector.multi_reduction <maximumf>, %54, %cst_22 [1] : vector<8x256xf32> to vector<8xf32>
    %57 = vector.shape_cast %56 : vector<8xf32> to vector<8x1xf32>
    %58 = arith.maximumf %55, %57 : vector<8x1xf32>
    %59 = arith.subf %55, %58 : vector<8x1xf32>
    %60 = math.exp %59 : vector<8x1xf32>
    %c0_23 = arith.constant 0 : index
    %c0_24 = arith.constant 0 : index
    %61 = vector.load %arg7[%c0_23, %c0_24] : memref<8x1xf32, #tpu.memory_space<vmem>>, vector<8x1xf32>
    %62 = arith.mulf %60, %61 : vector<8x1xf32>
    %63 = vector.broadcast %58 : vector<8x1xf32> to vector<8x256xf32>
    %64 = arith.subf %54, %63 : vector<8x256xf32>
    %65 = math.exp %64 : vector<8x256xf32>
    %cst_25 = arith.constant dense<0.000000e+00> : vector<8xf32>
    %66 = vector.multi_reduction <add>, %65, %cst_25 [1] : vector<8x256xf32> to vector<8xf32>
    %67 = vector.shape_cast %66 : vector<8xf32> to vector<8x1xf32>
    %68 = arith.addf %62, %67 : vector<8x1xf32>
    %c0_26 = arith.constant 0 : index
    %c0_27 = arith.constant 0 : index
    %69 = vector.load %arg7[%c0_26, %c0_27] : memref<8x1xf32, #tpu.memory_space<vmem>>, vector<8x1xf32>
    tpu.vector_store %arg7[%c0_26, %c0_27], %68 {strides = array<i32>} : memref<8x1xf32, #tpu.memory_space<vmem>>, vector<8x1xf32>,
    %c0_28 = arith.constant 0 : index
    %c0_29 = arith.constant 0 : index
    %70 = vector.load %arg6[%c0_28, %c0_29] : memref<8x1xf32, #tpu.memory_space<vmem>>, vector<8x1xf32>
    tpu.vector_store %arg6[%c0_28, %c0_29], %58 {strides = array<i32>} : memref<8x1xf32, #tpu.memory_space<vmem>>, vector<8x1xf32>,
    %c0_30 = arith.constant 0 : index
    %c0_31 = arith.constant 0 : index
    %71 = vector.load %arg8[%c0_30, %c0_31] : memref<8x1xf32, #tpu.memory_space<vmem>>, vector<8x1xf32>
    %72 = arith.select %28, %51, %71 : vector<8x1xi1>, vector<8x1xf32>
    %c0_32 = arith.constant 0 : index
    %c0_33 = arith.constant 0 : index
    %73 = vector.load %arg8[%c0_32, %c0_33] : memref<8x1xf32, #tpu.memory_space<vmem>>, vector<8x1xf32>
    tpu.vector_store %arg8[%c0_32, %c0_33], %72 {strides = array<i32>} : memref<8x1xf32, #tpu.memory_space<vmem>>, vector<8x1xf32>,
    %c0_i32_34 = arith.constant 0 : i32
    %74 = arith.cmpi eq, %arg1, %c0_i32_34 : i32
    %75 = arith.extui %74 : i1 to i32
    %c0_i32_35 = arith.constant 0 : i32
    %76 = arith.cmpi ne, %75, %c0_i32_35 : i32
    scf.if %76 {
      %c0_36 = arith.constant 0 : index
      %c0_37 = arith.constant 0 : index
      %77 = vector.load %arg7[%c0_36, %c0_37] : memref<8x1xf32, #tpu.memory_space<vmem>>, vector<8x1xf32>
      %78 = math.log %77 : vector<8x1xf32>
      %c0_38 = arith.constant 0 : index
      %c0_39 = arith.constant 0 : index
      %79 = vector.load %arg6[%c0_38, %c0_39] : memref<8x1xf32, #tpu.memory_space<vmem>>, vector<8x1xf32>
      %80 = arith.addf %78, %79 : vector<8x1xf32>
      %c0_40 = arith.constant 0 : index
      %c0_41 = arith.constant 0 : index
      %81 = vector.load %arg8[%c0_40, %c0_41] : memref<8x1xf32, #tpu.memory_space<vmem>>, vector<8x1xf32>
      %82 = arith.subf %80, %81 : vector<8x1xf32>
      %c0_42 = arith.constant 0 : index
      %c0_43 = arith.constant 0 : index
      %83 = vector.load %arg5[%c0_42, %c0_43] : memref<8x1xf32, #tpu.memory_space<vmem>>, vector<8x1xf32>
      tpu.vector_store %arg5[%c0_42, %c0_43], %82 {strides = array<i32>} : memref<8x1xf32, #tpu.memory_space<vmem>>, vector<8x1xf32>,
    } else {
    }
    return
  }
  func.func @transform_0(%arg0: i32, %arg1: i32) -> (i32, i32) {
    %c0_i32 = arith.constant 0 : i32
    %c0_i32_0 = arith.constant 0 : i32
    return %arg0, %c0_i32 : i32, i32
  }
  func.func @transform_1(%arg0: i32, %arg1: i32) -> (i32, i32) {
    %c0_i32 = arith.constant 0 : i32
    %c0_i32_0 = arith.constant 0 : i32
    return %arg0, %c0_i32 : i32, i32
  }
  func.func @transform_2(%arg0: i32, %arg1: i32) -> (i32, i32) {
    %c0_i32 = arith.constant 0 : i32
    %c0_i32_0 = arith.constant 0 : i32
    return %arg1, %c0_i32 : i32, i32
  }
  func.func @transform_3(%arg0: i32, %arg1: i32) -> (i32, i32) {
    %c0_i32 = arith.constant 0 : i32
    %c0_i32_0 = arith.constant 0 : i32
    return %arg0, %c0_i32 : i32, i32
  }
}

</mosaic_0001>

<llo_original>
// kernel: tpu_custom_call.1
$region0: #{tpu_custom_call.1}
  #allocation0 [shape = 'u32[]', space=smem, size = 0x4, offset = 0x4, fixed_abs, tag = 'smem constant byte address 0x4 - core index']
  #allocation1 [shape = 'u32[144,128]{1,0:T(1,128)}', space=vmem, size = 0x12000, scoped, tag = 'internal scratch']
  #allocation2 [shape = 'f32[8,1]{1,0:T(8,128)}', space=vmem, size = 0x1000, scoped, tag = 'scratch operand']
  #allocation3 [shape = 'f32[8,1]{1,0:T(8,128)}', space=vmem, size = 0x1000, scoped, tag = 'scratch operand']
  #allocation4 [shape = 'f32[8,1]{1,0:T(8,128)}', space=vmem, size = 0x1000, scoped, tag = 'scratch operand']
  %s0 = inlined_call_operand.vmem [shape: s32[8,1], index: 0, kind: input, shape index: {}]
  %s1 = inlined_call_operand.vmem [shape: f32[8,128], index: 1, kind: input, shape index: {}]
  %s2 = inlined_call_operand.hbm [shape: f32[256,128], index: 2, kind: input, shape index: {}]
  %s3 = inlined_call_operand.vmem [shape: f32[8,1], index: 3, kind: output, shape index: {}]
  %s4 = sld [smem:[#allocation0]]
  $region34: #{tpu_custom_call.1} parent=0
    _
  %s6 = ssub.s32 1, %s4
  %s7 = scalar_select 0, %s6, %s4
  $region1: #{tpu_custom_call.1} parent=0
    #allocation5 [shape = 'u8[131072]{0}', space=vmem, size = 0x20000, scoped, tag = 'input window, operand 2, single buffered']
    #allocation6 [shape = 's32[1]{0}', space=sflag, size = 0x4, scoped, tag = 'scoped memory for tpu_custom_call.1']
    %8 = vsyncpa [#allocation6], 0
    // Predicated region
    $region2: #{tpu_custom_call.1} parent=1 // pred_check
      _
    $region3: #{tpu_custom_call.1} parent=1 // pred_check_branch
      %10 = sbr.rel (0) target = $region5
    $region4: #{tpu_custom_call.1} parent=1 // pred_region
      _
    $region5: #{tpu_custom_call.1} parent=1 // pred_fallthru
      _
    // Predicated region
    $region6: #{tpu_custom_call.1} parent=1 // pred_check
      _
    $region7: #{tpu_custom_call.1} parent=1 // pred_check_branch
      %12 = sbr.rel (0) target = $region9
    $region8: #{tpu_custom_call.1} parent=1 // pred_region
      _
    $region9: #{tpu_custom_call.1} parent=1 // pred_fallthru
      _
    // Predicated region
    $region10: #{tpu_custom_call.1} parent=1 // pred_check
      _
    $region11: #{tpu_custom_call.1} parent=1 // pred_check_branch
      %14 = sbr.rel (0) target = $region13
    $region12: #{tpu_custom_call.1} parent=1 // pred_region
      %s16 = ssub.s32 4096, 4096
      %17 = vsyncadd [#allocation6], %s16
      %s18 = sshll.u32 [#allocation5], 4
      %s19 = int_to_ptr.vmem [resolvable:$true] %s18
      %24 = dma.hbm_to_vmem [thread:$0]  %s2, 4096, %s19, [#allocation6], 128, 128, 8
    $region13: #{tpu_custom_call.1} parent=1 // pred_fallthru
      _
    // Predicated region
    $region14: #{tpu_custom_call.1} parent=1 // pred_check
      _
    $region15: #{tpu_custom_call.1} parent=1 // pred_check_branch
      %26 = sbr.rel (0) target = $region17
    $region16: #{tpu_custom_call.1} parent=1 // pred_region
      %27 = dma.done [#allocation6], 4096
    $region17: #{tpu_custom_call.1} parent=1 // pred_fallthru
      _
    %p28 = scmp.eq.s32.totalorder 0, 0
    // Predicated region
    $region18: #{tpu_custom_call.1} parent=1 // pred_check
      %p29 = pneg %p28
    $region19: #{tpu_custom_call.1} parent=1 // pred_check_branch
      %31 = sbr.rel (%p29) target = $region21
    $region20: #{tpu_custom_call.1} parent=1 // pred_region
      %vm32 = vcmask 7168
      %33 = vst.msk [vmem:[#allocation2] sm:$0xff] %vm32, -inf
      %34 = vst.msk [vmem:[#allocation3] sm:$0xff] %vm32, 0.0
      %35 = vst.msk [vmem:[#allocation4] sm:$0xff] %vm32, 0.0
    $region21: #{tpu_custom_call.1} parent=1 // pred_fallthru
      _
    %v36 = vld [vmem:[%s0] sm:$0xff]
    %v37 = vld [vmem:[#allocation5] sm:$0xff]
    %v38 = vld [vmem:[#allocation5 + $0x8] sm:$0xff]
    %v39 = vld [vmem:[#allocation5 + $0x10] sm:$0xff]
    %v40 = vld [vmem:[#allocation5 + $0x18] sm:$0xff]
    %v41 = vld [vmem:[#allocation5 + $0x20] sm:$0xff]
    %v42 = vld [vmem:[#allocation5 + $0x28] sm:$0xff]
    %v43 = vld [vmem:[#allocation5 + $0x30] sm:$0xff]
    %v44 = vld [vmem:[#allocation5 + $0x38] sm:$0xff]
    %v45 = vld [vmem:[#allocation5 + $0x40] sm:$0xff]
    %v46 = vld [vmem:[#allocation5 + $0x48] sm:$0xff]
    %v47 = vld [vmem:[#allocation5 + $0x50] sm:$0xff]
    %v48 = vld [vmem:[#allocation5 + $0x58] sm:$0xff]
    %v49 = vld [vmem:[#allocation5 + $0x60] sm:$0xff]
    %v50 = vld [vmem:[#allocation5 + $0x68] sm:$0xff]
    %v51 = vld [vmem:[#allocation5 + $0x70] sm:$0xff]
    %v52 = vld [vmem:[#allocation5 + $0x78] sm:$0xff]
    %v53 = vld [vmem:[#allocation5 + $0x80] sm:$0xff]
    %v54 = vld [vmem:[#allocation5 + $0x88] sm:$0xff]
    %v55 = vld [vmem:[#allocation5 + $0x90] sm:$0xff]
    %v56 = vld [vmem:[#allocation5 + $0x98] sm:$0xff]
    %v57 = vld [vmem:[#allocation5 + $0xa0] sm:$0xff]
    %v58 = vld [vmem:[#allocation5 + $0xa8] sm:$0xff]
    %v59 = vld [vmem:[#allocation5 + $0xb0] sm:$0xff]
    %v60 = vld [vmem:[#allocation5 + $0xb8] sm:$0xff]
    %v61 = vld [vmem:[#allocation5 + $0xc0] sm:$0xff]
    %v62 = vld [vmem:[#allocation5 + $0xc8] sm:$0xff]
    %v63 = vld [vmem:[#allocation5 + $0xd0] sm:$0xff]
    %v64 = vld [vmem:[#allocation5 + $0xd8] sm:$0xff]
    %v65 = vld [vmem:[#allocation5 + $0xe0] sm:$0xff]
    %v66 = vld [vmem:[#allocation5 + $0xe8] sm:$0xff]
    %v67 = vld [vmem:[#allocation5 + $0xf0] sm:$0xff]
    %v68 = vld [vmem:[#allocation5 + $0xf8] sm:$0xff]
    %v69 = vmul.f32 %v37, %v37
    %v70 = vmul.f32 %v38, %v38
    %v71 = vmul.f32 %v39, %v39
    %v72 = vmul.f32 %v40, %v40
    %v73 = vmul.f32 %v41, %v41
    %v74 = vmul.f32 %v42, %v42
    %v75 = vmul.f32 %v43, %v43
    %v76 = vmul.f32 %v44, %v44
    %v77 = vmul.f32 %v45, %v45
    %v78 = vmul.f32 %v46, %v46
    %v79 = vmul.f32 %v47, %v47
    %v80 = vmul.f32 %v48, %v48
    %v81 = vmul.f32 %v49, %v49
    %v82 = vmul.f32 %v50, %v50
    %v83 = vmul.f32 %v51, %v51
    %v84 = vmul.f32 %v52, %v52
    %v85 = vmul.f32 %v53, %v53
    %v86 = vmul.f32 %v54, %v54
    %v87 = vmul.f32 %v55, %v55
    %v88 = vmul.f32 %v56, %v56
    %v89 = vmul.f32 %v57, %v57
    %v90 = vmul.f32 %v58, %v58
    %v91 = vmul.f32 %v59, %v59
    %v92 = vmul.f32 %v60, %v60
    %v93 = vmul.f32 %v61, %v61
    %v94 = vmul.f32 %v62, %v62
    %v95 = vmul.f32 %v63, %v63
    %v96 = vmul.f32 %v64, %v64
    %v97 = vmul.f32 %v65, %v65
    %v98 = vmul.f32 %v66, %v66
    %v99 = vmul.f32 %v67, %v67
    %v100 = vmul.f32 %v68, %v68
    %101 = vadd.xlane.f32.xlu0 %v69
    %v102 = vpop.xlane.xlu0 %101
    %103 = vadd.xlane.f32.xlu0 %v70
    %v104 = vpop.xlane.xlu0 %103
    %105 = vadd.xlane.f32.xlu0 %v71
    %v106 = vpop.xlane.xlu0 %105
    %107 = vadd.xlane.f32.xlu0 %v72
    %v108 = vpop.xlane.xlu0 %107
    %109 = vadd.xlane.f32.xlu0 %v73
    %v110 = vpop.xlane.xlu0 %109
    %111 = vadd.xlane.f32.xlu0 %v74
    %v112 = vpop.xlane.xlu0 %111
    %113 = vadd.xlane.f32.xlu0 %v75
    %v114 = vpop.xlane.xlu0 %113
    %115 = vadd.xlane.f32.xlu0 %v76
    %v116 = vpop.xlane.xlu0 %115
    %117 = vadd.xlane.f32.xlu0 %v77
    %v118 = vpop.xlane.xlu0 %117
    %119 = vadd.xlane.f32.xlu0 %v78
    %v120 = vpop.xlane.xlu0 %119
    %121 = vadd.xlane.f32.xlu0 %v79
    %v122 = vpop.xlane.xlu0 %121
    %123 = vadd.xlane.f32.xlu0 %v80
    %v124 = vpop.xlane.xlu0 %123
    %125 = vadd.xlane.f32.xlu0 %v81
    %v126 = vpop.xlane.xlu0 %125
    %127 = vadd.xlane.f32.xlu0 %v82
    %v128 = vpop.xlane.xlu0 %127
    %129 = vadd.xlane.f32.xlu0 %v83
    %v130 = vpop.xlane.xlu0 %129
    %131 = vadd.xlane.f32.xlu0 %v84
    %v132 = vpop.xlane.xlu0 %131
    %133 = vadd.xlane.f32.xlu0 %v85
    %v134 = vpop.xlane.xlu0 %133
    %135 = vadd.xlane.f32.xlu0 %v86
    %v136 = vpop.xlane.xlu0 %135
    %137 = vadd.xlane.f32.xlu0 %v87
    %v138 = vpop.xlane.xlu0 %137
    %139 = vadd.xlane.f32.xlu0 %v88
    %v140 = vpop.xlane.xlu0 %139
    %141 = vadd.xlane.f32.xlu0 %v89
    %v142 = vpop.xlane.xlu0 %141
    %143 = vadd.xlane.f32.xlu0 %v90
    %v144 = vpop.xlane.xlu0 %143
    %145 = vadd.xlane.f32.xlu0 %v91
    %v146 = vpop.xlane.xlu0 %145
    %147 = vadd.xlane.f32.xlu0 %v92
    %v148 = vpop.xlane.xlu0 %147
    %149 = vadd.xlane.f32.xlu0 %v93
    %v150 = vpop.xlane.xlu0 %149
    %151 = vadd.xlane.f32.xlu0 %v94
    %v152 = vpop.xlane.xlu0 %151
    %153 = vadd.xlane.f32.xlu0 %v95
    %v154 = vpop.xlane.xlu0 %153
    %155 = vadd.xlane.f32.xlu0 %v96
    %v156 = vpop.xlane.xlu0 %155
    %157 = vadd.xlane.f32.xlu0 %v97
    %v158 = vpop.xlane.xlu0 %157
    %159 = vadd.xlane.f32.xlu0 %v98
    %v160 = vpop.xlane.xlu0 %159
    %161 = vadd.xlane.f32.xlu0 %v99
    %v162 = vpop.xlane.xlu0 %161
    %163 = vadd.xlane.f32.xlu0 %v100
    %v164 = vpop.xlane.xlu0 %163
    %v165 = vrsqrt.pop %v102
    %v166 = vmul.f32 %v102, %v165
    %vm167 = vcmp.eq.f32.partialorder %v102, inf
    %v168 = vsel %vm167, %v102, %v166
    %vm169 = vcmp.eq.f32.partialorder %v102, 0.0
    %v170 = vand.u32 %v102, 2147483648
    %v171 = vsel %vm169, %v170, %v168
    %v172 = vrsqrt.pop %v104
    %v173 = vmul.f32 %v104, %v172
    %vm174 = vcmp.eq.f32.partialorder %v104, inf
    %v175 = vsel %vm174, %v104, %v173
    %vm176 = vcmp.eq.f32.partialorder %v104, 0.0
    %v177 = vand.u32 %v104, 2147483648
    %v178 = vsel %vm176, %v177, %v175
    %v179 = vrsqrt.pop %v106
    %v180 = vmul.f32 %v106, %v179
    %vm181 = vcmp.eq.f32.partialorder %v106, inf
    %v182 = vsel %vm181, %v106, %v180
    %vm183 = vcmp.eq.f32.partialorder %v106, 0.0
    %v184 = vand.u32 %v106, 2147483648
    %v185 = vsel %vm183, %v184, %v182
    %v186 = vrsqrt.pop %v108
    %v187 = vmul.f32 %v108, %v186
    %vm188 = vcmp.eq.f32.partialorder %v108, inf
    %v189 = vsel %vm188, %v108, %v187
    %vm190 = vcmp.eq.f32.partialorder %v108, 0.0
    %v191 = vand.u32 %v108, 2147483648
    %v192 = vsel %vm190, %v191, %v189
    %v193 = vrsqrt.pop %v110
    %v194 = vmul.f32 %v110, %v193
    %vm195 = vcmp.eq.f32.partialorder %v110, inf
    %v196 = vsel %vm195, %v110, %v194
    %vm197 = vcmp.eq.f32.partialorder %v110, 0.0
    %v198 = vand.u32 %v110, 2147483648
    %v199 = vsel %vm197, %v198, %v196
    %v200 = vrsqrt.pop %v112
    %v201 = vmul.f32 %v112, %v200
    %vm202 = vcmp.eq.f32.partialorder %v112, inf
    %v203 = vsel %vm202, %v112, %v201
    %vm204 = vcmp.eq.f32.partialorder %v112, 0.0
    %v205 = vand.u32 %v112, 2147483648
    %v206 = vsel %vm204, %v205, %v203
    %v207 = vrsqrt.pop %v114
    %v208 = vmul.f32 %v114, %v207
    %vm209 = vcmp.eq.f32.partialorder %v114, inf
    %v210 = vsel %vm209, %v114, %v208
    %vm211 = vcmp.eq.f32.partialorder %v114, 0.0
    %v212 = vand.u32 %v114, 2147483648
    %v213 = vsel %vm211, %v212, %v210
    %v214 = vrsqrt.pop %v116
    %v215 = vmul.f32 %v116, %v214
    %vm216 = vcmp.eq.f32.partialorder %v116, inf
    %v217 = vsel %vm216, %v116, %v215
    %vm218 = vcmp.eq.f32.partialorder %v116, 0.0
    %v219 = vand.u32 %v116, 2147483648
    %v220 = vsel %vm218, %v219, %v217
    %v221 = vrsqrt.pop %v118
    %v222 = vmul.f32 %v118, %v221
    %vm223 = vcmp.eq.f32.partialorder %v118, inf
    %v224 = vsel %vm223, %v118, %v222
    %vm225 = vcmp.eq.f32.partialorder %v118, 0.0
    %v226 = vand.u32 %v118, 2147483648
    %v227 = vsel %vm225, %v226, %v224
    %v228 = vrsqrt.pop %v120
    %v229 = vmul.f32 %v120, %v228
    %vm230 = vcmp.eq.f32.partialorder %v120, inf
    %v231 = vsel %vm230, %v120, %v229
    %vm232 = vcmp.eq.f32.partialorder %v120, 0.0
    %v233 = vand.u32 %v120, 2147483648
    %v234 = vsel %vm232, %v233, %v231
    %v235 = vrsqrt.pop %v122
    %v236 = vmul.f32 %v122, %v235
    %vm237 = vcmp.eq.f32.partialorder %v122, inf
    %v238 = vsel %vm237, %v122, %v236
    %vm239 = vcmp.eq.f32.partialorder %v122, 0.0
    %v240 = vand.u32 %v122, 2147483648
    %v241 = vsel %vm239, %v240, %v238
    %v242 = vrsqrt.pop %v124
    %v243 = vmul.f32 %v124, %v242
    %vm244 = vcmp.eq.f32.partialorder %v124, inf
    %v245 = vsel %vm244, %v124, %v243
    %vm246 = vcmp.eq.f32.partialorder %v124, 0.0
    %v247 = vand.u32 %v124, 2147483648
    %v248 = vsel %vm246, %v247, %v245
    %v249 = vrsqrt.pop %v126
    %v250 = vmul.f32 %v126, %v249
    %vm251 = vcmp.eq.f32.partialorder %v126, inf
    %v252 = vsel %vm251, %v126, %v250
    %vm253 = vcmp.eq.f32.partialorder %v126, 0.0
    %v254 = vand.u32 %v126, 2147483648
    %v255 = vsel %vm253, %v254, %v252
    %v256 = vrsqrt.pop %v128
    %v257 = vmul.f32 %v128, %v256
    %vm258 = vcmp.eq.f32.partialorder %v128, inf
    %v259 = vsel %vm258, %v128, %v257
    %vm260 = vcmp.eq.f32.partialorder %v128, 0.0
    %v261 = vand.u32 %v128, 2147483648
    %v262 = vsel %vm260, %v261, %v259
    %v263 = vrsqrt.pop %v130
    %v264 = vmul.f32 %v130, %v263
    %vm265 = vcmp.eq.f32.partialorder %v130, inf
    %v266 = vsel %vm265, %v130, %v264
    %vm267 = vcmp.eq.f32.partialorder %v130, 0.0
    %v268 = vand.u32 %v130, 2147483648
    %v269 = vsel %vm267, %v268, %v266
    %v270 = vrsqrt.pop %v132
    %v271 = vmul.f32 %v132, %v270
    %vm272 = vcmp.eq.f32.partialorder %v132, inf
    %v273 = vsel %vm272, %v132, %v271
    %vm274 = vcmp.eq.f32.partialorder %v132, 0.0
    %v275 = vand.u32 %v132, 2147483648
    %v276 = vsel %vm274, %v275, %v273
    %v277 = vrsqrt.pop %v134
    %v278 = vmul.f32 %v134, %v277
    %vm279 = vcmp.eq.f32.partialorder %v134, inf
    %v280 = vsel %vm279, %v134, %v278
    %vm281 = vcmp.eq.f32.partialorder %v134, 0.0
    %v282 = vand.u32 %v134, 2147483648
    %v283 = vsel %vm281, %v282, %v280
    %v284 = vrsqrt.pop %v136
    %v285 = vmul.f32 %v136, %v284
    %vm286 = vcmp.eq.f32.partialorder %v136, inf
    %v287 = vsel %vm286, %v136, %v285
    %vm288 = vcmp.eq.f32.partialorder %v136, 0.0
    %v289 = vand.u32 %v136, 2147483648
    %v290 = vsel %vm288, %v289, %v287
    %v291 = vrsqrt.pop %v138
    %v292 = vmul.f32 %v138, %v291
    %vm293 = vcmp.eq.f32.partialorder %v138, inf
    %v294 = vsel %vm293, %v138, %v292
    %vm295 = vcmp.eq.f32.partialorder %v138, 0.0
    %v296 = vand.u32 %v138, 2147483648
    %v297 = vsel %vm295, %v296, %v294
    %v298 = vrsqrt.pop %v140
    %v299 = vmul.f32 %v140, %v298
    %vm300 = vcmp.eq.f32.partialorder %v140, inf
    %v301 = vsel %vm300, %v140, %v299
    %vm302 = vcmp.eq.f32.partialorder %v140, 0.0
    %v303 = vand.u32 %v140, 2147483648
    %v304 = vsel %vm302, %v303, %v301
    %v305 = vrsqrt.pop %v142
    %v306 = vmul.f32 %v142, %v305
    %vm307 = vcmp.eq.f32.partialorder %v142, inf
    %v308 = vsel %vm307, %v142, %v306
    %vm309 = vcmp.eq.f32.partialorder %v142, 0.0
    %v310 = vand.u32 %v142, 2147483648
    %v311 = vsel %vm309, %v310, %v308
    %v312 = vrsqrt.pop %v144
    %v313 = vmul.f32 %v144, %v312
    %vm314 = vcmp.eq.f32.partialorder %v144, inf
    %v315 = vsel %vm314, %v144, %v313
    %vm316 = vcmp.eq.f32.partialorder %v144, 0.0
    %v317 = vand.u32 %v144, 2147483648
    %v318 = vsel %vm316, %v317, %v315
    %v319 = vrsqrt.pop %v146
    %v320 = vmul.f32 %v146, %v319
    %vm321 = vcmp.eq.f32.partialorder %v146, inf
    %v322 = vsel %vm321, %v146, %v320
    %vm323 = vcmp.eq.f32.partialorder %v146, 0.0
    %v324 = vand.u32 %v146, 2147483648
    %v325 = vsel %vm323, %v324, %v322
    %v326 = vrsqrt.pop %v148
    %v327 = vmul.f32 %v148, %v326
    %vm328 = vcmp.eq.f32.partialorder %v148, inf
    %v329 = vsel %vm328, %v148, %v327
    %vm330 = vcmp.eq.f32.partialorder %v148, 0.0
    %v331 = vand.u32 %v148, 2147483648
    %v332 = vsel %vm330, %v331, %v329
    %v333 = vrsqrt.pop %v150
    %v334 = vmul.f32 %v150, %v333
    %vm335 = vcmp.eq.f32.partialorder %v150, inf
    %v336 = vsel %vm335, %v150, %v334
    %vm337 = vcmp.eq.f32.partialorder %v150, 0.0
    %v338 = vand.u32 %v150, 2147483648
    %v339 = vsel %vm337, %v338, %v336
    %v340 = vrsqrt.pop %v152
    %v341 = vmul.f32 %v152, %v340
    %vm342 = vcmp.eq.f32.partialorder %v152, inf
    %v343 = vsel %vm342, %v152, %v341
    %vm344 = vcmp.eq.f32.partialorder %v152, 0.0
    %v345 = vand.u32 %v152, 2147483648
    %v346 = vsel %vm344, %v345, %v343
    %v347 = vrsqrt.pop %v154
    %v348 = vmul.f32 %v154, %v347
    %vm349 = vcmp.eq.f32.partialorder %v154, inf
    %v350 = vsel %vm349, %v154, %v348
    %vm351 = vcmp.eq.f32.partialorder %v154, 0.0
    %v352 = vand.u32 %v154, 2147483648
    %v353 = vsel %vm351, %v352, %v350
    %v354 = vrsqrt.pop %v156
    %v355 = vmul.f32 %v156, %v354
    %vm356 = vcmp.eq.f32.partialorder %v156, inf
    %v357 = vsel %vm356, %v156, %v355
    %vm358 = vcmp.eq.f32.partialorder %v156, 0.0
    %v359 = vand.u32 %v156, 2147483648
    %v360 = vsel %vm358, %v359, %v357
    %v361 = vrsqrt.pop %v158
    %v362 = vmul.f32 %v158, %v361
    %vm363 = vcmp.eq.f32.partialorder %v158, inf
    %v364 = vsel %vm363, %v158, %v362
    %vm365 = vcmp.eq.f32.partialorder %v158, 0.0
    %v366 = vand.u32 %v158, 2147483648
    %v367 = vsel %vm365, %v366, %v364
    %v368 = vrsqrt.pop %v160
    %v369 = vmul.f32 %v160, %v368
    %vm370 = vcmp.eq.f32.partialorder %v160, inf
    %v371 = vsel %vm370, %v160, %v369
    %vm372 = vcmp.eq.f32.partialorder %v160, 0.0
    %v373 = vand.u32 %v160, 2147483648
    %v374 = vsel %vm372, %v373, %v371
    %v375 = vrsqrt.pop %v162
    %v376 = vmul.f32 %v162, %v375
    %vm377 = vcmp.eq.f32.partialorder %v162, inf
    %v378 = vsel %vm377, %v162, %v376
    %vm379 = vcmp.eq.f32.partialorder %v162, 0.0
    %v380 = vand.u32 %v162, 2147483648
    %v381 = vsel %vm379, %v380, %v378
    %v382 = vrsqrt.pop %v164
    %v383 = vmul.f32 %v164, %v382
    %vm384 = vcmp.eq.f32.partialorder %v164, inf
    %v385 = vsel %vm384, %v164, %v383
    %vm386 = vcmp.eq.f32.partialorder %v164, 0.0
    %v387 = vand.u32 %v164, 2147483648
    %v388 = vsel %vm386, %v387, %v385
    %v389 = vmax.f32 %v171, 1e-12
    %v390 = vmax.f32 %v178, 1e-12
    %v391 = vmax.f32 %v185, 1e-12
    %v392 = vmax.f32 %v192, 1e-12
    %v393 = vmax.f32 %v199, 1e-12
    %v394 = vmax.f32 %v206, 1e-12
    %v395 = vmax.f32 %v213, 1e-12
    %v396 = vmax.f32 %v220, 1e-12
    %v397 = vmax.f32 %v227, 1e-12
    %v398 = vmax.f32 %v234, 1e-12
    %v399 = vmax.f32 %v241, 1e-12
    %v400 = vmax.f32 %v248, 1e-12
    %v401 = vmax.f32 %v255, 1e-12
    %v402 = vmax.f32 %v262, 1e-12
    %v403 = vmax.f32 %v269, 1e-12
    %v404 = vmax.f32 %v276, 1e-12
    %v405 = vmax.f32 %v283, 1e-12
    %v406 = vmax.f32 %v290, 1e-12
    %v407 = vmax.f32 %v297, 1e-12
    %v408 = vmax.f32 %v304, 1e-12
    %v409 = vmax.f32 %v311, 1e-12
    %v410 = vmax.f32 %v318, 1e-12
    %v411 = vmax.f32 %v325, 1e-12
    %v412 = vmax.f32 %v332, 1e-12
    %v413 = vmax.f32 %v339, 1e-12
    %v414 = vmax.f32 %v346, 1e-12
    %v415 = vmax.f32 %v353, 1e-12
    %v416 = vmax.f32 %v360, 1e-12
    %v417 = vmax.f32 %v367, 1e-12
    %v418 = vmax.f32 %v374, 1e-12
    %v419 = vmax.f32 %v381, 1e-12
    %v420 = vmax.f32 %v388, 1e-12
    %v421 = vrcp.pop %v389
    %v422 = vmul.f32 1.0, %v421
    %v423 = vrcp.pop %v390
    %v424 = vmul.f32 1.0, %v423
    %v425 = vrcp.pop %v391
    %v426 = vmul.f32 1.0, %v425
    %v427 = vrcp.pop %v392
    %v428 = vmul.f32 1.0, %v427
    %v429 = vrcp.pop %v393
    %v430 = vmul.f32 1.0, %v429
    %v431 = vrcp.pop %v394
    %v432 = vmul.f32 1.0, %v431
    %v433 = vrcp.pop %v395
    %v434 = vmul.f32 1.0, %v433
    %v435 = vrcp.pop %v396
    %v436 = vmul.f32 1.0, %v435
    %v437 = vrcp.pop %v397
    %v438 = vmul.f32 1.0, %v437
    %v439 = vrcp.pop %v398
    %v440 = vmul.f32 1.0, %v439
    %v441 = vrcp.pop %v399
    %v442 = vmul.f32 1.0, %v441
    %v443 = vrcp.pop %v400
    %v444 = vmul.f32 1.0, %v443
    %v445 = vrcp.pop %v401
    %v446 = vmul.f32 1.0, %v445
    %v447 = vrcp.pop %v402
    %v448 = vmul.f32 1.0, %v447
    %v449 = vrcp.pop %v403
    %v450 = vmul.f32 1.0, %v449
    %v451 = vrcp.pop %v404
    %v452 = vmul.f32 1.0, %v451
    %v453 = vrcp.pop %v405
    %v454 = vmul.f32 1.0, %v453
    %v455 = vrcp.pop %v406
    %v456 = vmul.f32 1.0, %v455
    %v457 = vrcp.pop %v407
    %v458 = vmul.f32 1.0, %v457
    %v459 = vrcp.pop %v408
    %v460 = vmul.f32 1.0, %v459
    %v461 = vrcp.pop %v409
    %v462 = vmul.f32 1.0, %v461
    %v463 = vrcp.pop %v410
    %v464 = vmul.f32 1.0, %v463
    %v465 = vrcp.pop %v411
    %v466 = vmul.f32 1.0, %v465
    %v467 = vrcp.pop %v412
    %v468 = vmul.f32 1.0, %v467
    %v469 = vrcp.pop %v413
    %v470 = vmul.f32 1.0, %v469
    %v471 = vrcp.pop %v414
    %v472 = vmul.f32 1.0, %v471
    %v473 = vrcp.pop %v415
    %v474 = vmul.f32 1.0, %v473
    %v475 = vrcp.pop %v416
    %v476 = vmul.f32 1.0, %v475
    %v477 = vrcp.pop %v417
    %v478 = vmul.f32 1.0, %v477
    %v479 = vrcp.pop %v418
    %v480 = vmul.f32 1.0, %v479
    %v481 = vrcp.pop %v419
    %v482 = vmul.f32 1.0, %v481
    %v483 = vrcp.pop %v420
    %v484 = vmul.f32 1.0, %v483
    %v485 = vmul.f32 %v37, %v422
    %v486 = vmul.f32 %v38, %v424
    %v487 = vmul.f32 %v39, %v426
    %v488 = vmul.f32 %v40, %v428
    %v489 = vmul.f32 %v41, %v430
    %v490 = vmul.f32 %v42, %v432
    %v491 = vmul.f32 %v43, %v434
    %v492 = vmul.f32 %v44, %v436
    %v493 = vmul.f32 %v45, %v438
    %v494 = vmul.f32 %v46, %v440
    %v495 = vmul.f32 %v47, %v442
    %v496 = vmul.f32 %v48, %v444
    %v497 = vmul.f32 %v49, %v446
    %v498 = vmul.f32 %v50, %v448
    %v499 = vmul.f32 %v51, %v450
    %v500 = vmul.f32 %v52, %v452
    %v501 = vmul.f32 %v53, %v454
    %v502 = vmul.f32 %v54, %v456
    %v503 = vmul.f32 %v55, %v458
    %v504 = vmul.f32 %v56, %v460
    %v505 = vmul.f32 %v57, %v462
    %v506 = vmul.f32 %v58, %v464
    %v507 = vmul.f32 %v59, %v466
    %v508 = vmul.f32 %v60, %v468
    %v509 = vmul.f32 %v61, %v470
    %v510 = vmul.f32 %v62, %v472
    %v511 = vmul.f32 %v63, %v474
    %v512 = vmul.f32 %v64, %v476
    %v513 = vmul.f32 %v65, %v478
    %v514 = vmul.f32 %v66, %v480
    %v515 = vmul.f32 %v67, %v482
    %v516 = vmul.f32 %v68, %v484
    %v517 = vld [vmem:[%s1] sm:$0xff]
    %518 = vmatprep.subr.mxu0 0.0
    %519 = vmatpush1.xpose.msra.mxu0 %v485
    %520 = vmatprep.subr.mxu0 0.0
    %521 = vmatpush1.xpose.msra.mxu0 %v486
    %522 = vmatprep.subr.mxu0 0.0
    %523 = vmatpush1.xpose.msra.mxu0 %v487
    %524 = vmatprep.subr.mxu0 0.0
    %525 = vmatpush1.xpose.msra.mxu0 %v488
    %526 = vmatprep.subr.mxu0 0.0
    %527 = vmatpush1.xpose.msra.mxu0 %v489
    %528 = vmatprep.subr.mxu0 0.0
    %529 = vmatpush1.xpose.msra.mxu0 %v490
    %530 = vmatprep.subr.mxu0 0.0
    %531 = vmatpush1.xpose.msra.mxu0 %v491
    %532 = vmatprep.subr.mxu0 0.0
    %533 = vmatpush1.xpose.msra.mxu0 %v492
    %534 = vmatprep.subr.mxu0 0.0
    %535 = vmatpush1.xpose.msra.mxu0 %v493
    %536 = vmatprep.subr.mxu0 0.0
    %537 = vmatpush1.xpose.msra.mxu0 %v494
    %538 = vmatprep.subr.mxu0 0.0
    %539 = vmatpush1.xpose.msra.mxu0 %v495
    %540 = vmatprep.subr.mxu0 0.0
    %541 = vmatpush1.xpose.msra.mxu0 %v496
    %542 = vmatprep.subr.mxu0 0.0
    %543 = vmatpush1.xpose.msra.mxu0 %v497
    %544 = vmatprep.subr.mxu0 0.0
    %545 = vmatpush1.xpose.msra.mxu0 %v498
    %546 = vmatprep.subr.mxu0 0.0
    %547 = vmatpush1.xpose.msra.mxu0 %v499
    %548 = vmatprep.subr.mxu0 0.0
    %549 = vmatpush1.xpose.msra.mxu0 %v500
    %550 = vmatprep.subr.mxu0 0.0
    %551 = vmatpush1.xpose.msra.mxu0 %v501
    %552 = vmatprep.subr.mxu0 0.0
    %553 = vmatpush1.xpose.msra.mxu0 %v502
    %554 = vmatprep.subr.mxu0 0.0
    %555 = vmatpush1.xpose.msra.mxu0 %v503
    %556 = vmatprep.subr.mxu0 0.0
    %557 = vmatpush1.xpose.msra.mxu0 %v504
    %558 = vmatprep.subr.mxu0 0.0
    %559 = vmatpush1.xpose.msra.mxu0 %v505
    %560 = vmatprep.subr.mxu0 0.0
    %561 = vmatpush1.xpose.msra.mxu0 %v506
    %562 = vmatprep.subr.mxu0 0.0
    %563 = vmatpush1.xpose.msra.mxu0 %v507
    %564 = vmatprep.subr.mxu0 0.0
    %565 = vmatpush1.xpose.msra.mxu0 %v508
    %566 = vmatprep.subr.mxu0 0.0
    %567 = vmatpush1.xpose.msra.mxu0 %v509
    %568 = vmatprep.subr.mxu0 0.0
    %569 = vmatpush1.xpose.msra.mxu0 %v510
    %570 = vmatprep.subr.mxu0 0.0
    %571 = vmatpush1.xpose.msra.mxu0 %v511
    %572 = vmatprep.subr.mxu0 0.0
    %573 = vmatpush1.xpose.msra.mxu0 %v512
    %574 = vmatprep.subr.mxu0 0.0
    %575 = vmatpush1.xpose.msra.mxu0 %v513
    %576 = vmatprep.subr.mxu0 0.0
    %577 = vmatpush1.xpose.msra.mxu0 %v514
    %578 = vmatprep.subr.mxu0 0.0
    %579 = vmatpush1.xpose.msra.mxu0 %v515
    %580 = vmatprep.subr.mxu0 0.0
    %581 = vmatpush1.xpose.msra.mxu0 %v516
    %582 = vmatprep.mubr.f32.mxu0 0.0
    %583 = vmatmul.mubr.f32.gmra.mrb[0].mxu0 %v517
    %v584 = vpop.f32.mrb[0].mxu0
    %v585 = vadd.f32 0.0, %v584
    %v586 = vpop.f32.mrb[0].mxu0
    %v587 = vadd.f32 0.0, %v586
    %588 = vdwg.mxu0
    %s589 = smul.u32 0, 256
    %v590 = vlaneseq
    %v591 = vand.u32 %v590, 127
    %v592 = vadd.s32 %v591, 128
    %v593 = vstv %s589
    %v594 = vadd.s32 %v591, %v593
    %v595 = vadd.s32 %v592, %v593
    %596 = vset.pattern.permute.xlu0 0
    %597 = vperm.xlu0 %596, %v36
    %v598 = vpop.permute.xlu0 %597
    %vm599 = vcmp.eq.s32.totalorder %v594, %v598
    %vm600 = vcmp.eq.s32.totalorder %v595, %v598
    %vm601 = vcmp.ge.s32.totalorder %v36, %v593
    %s602 = sadd.s32 %s589, 256
    %v603 = vstv %s602
    %vm604 = vcmp.lt.s32.totalorder %v36, %v603
    %vm605 = vmand %vm601, %vm604
    %v606 = vsel %vm599, %v585, 0.0
    %v607 = vsel %vm600, %v587, 0.0
    %v608 = vadd.f32 %v606, %v607
    %609 = vadd.xlane.f32.xlu0 %v608
    %v610 = vpop.xlane.xlu0 %609
    %v611 = vmul.f32 %v610, 0.015625
    %v612 = vmax.f32 %v611, -0.9999999
    %v613 = vmin.f32 %v612, 0.9999999
    %v614 = vmul.f32 %v613, %v613
    %v615 = vsub.f32 1.0, %v614
    %v616 = vmax.f32 %v615, 0.0
    %v617 = vrsqrt.pop %v616
    %v618 = vmul.f32 %v616, %v617
    %vm619 = vcmp.eq.f32.partialorder %v616, inf
    %v620 = vsel %vm619, %v616, %v618
    %vm621 = vcmp.eq.f32.partialorder %v616, 0.0
    %v622 = vand.u32 %v616, 2147483648
    %v623 = vsel %vm621, %v622, %v620
    %v624 = vmul.f32 %v613, 0.87758255
    %v625 = vmul.f32 %v623, 0.47942555
    %v626 = vsub.f32 %v624, %v625
    %v627 = vmul.f32 %v626, 64.0
    %v628 = vsel %vm599, %v627, %v585
    %v629 = vsel %vm600, %v627, %v587
    %v630 = vld [vmem:[#allocation2] sm:$0xff]
    %v631 = vmax.f32 %v628, %v629
    %632 = vmax.xlane.f32.xlu0 %v631
    %v633 = vpop.xlane.xlu0 %632
    %v634 = vmax.f32 %v630, %v633
    %v635 = vsub.f32 %v630, %v634
    %v636 = vmul.f32 %v635, 1.442695
    %v637 = vpow.pop %v636
    %v638 = vld [vmem:[#allocation3] sm:$0xff]
    %v639 = vmul.f32 %v637, %v638
    %641 = vset.pattern.permute.xlu0 0
    %642 = vperm.xlu0 %641, %v634
    %v643 = vpop.permute.xlu0 %642
    %v645 = vsub.f32 %v628, %v643
    %v646 = vsub.f32 %v629, %v643
    %v647 = vmul.f32 %v645, 1.442695
    %v648 = vpow.pop %v647
    %v649 = vmul.f32 %v646, 1.442695
    %v650 = vpow.pop %v649
    %v651 = vadd.f32 %v648, %v650
    %652 = vadd.xlane.f32.xlu0 %v651
    %v653 = vpop.xlane.xlu0 %652
    %v654 = vadd.f32 %v639, %v653
    %vm655 = vcmask 7168
    %656 = vst.msk [vmem:[#allocation3] sm:$0xff] %vm655, %v654
    %657 = vst.msk [vmem:[#allocation2] sm:$0xff] %vm655, %v634
    %v658 = vld [vmem:[#allocation4] sm:$0xff]
    %v659 = vsel %vm605, %v627, %v658
    %660 = vst.msk [vmem:[#allocation4] sm:$0xff] %vm655, %v659
    // Predicated region
    $region22: #{tpu_custom_call.1} parent=1 // pred_check
      %p661 = pneg %p28
    $region23: #{tpu_custom_call.1} parent=1 // pred_check_branch
      %663 = sbr.rel (%p661) target = $region25
    $region24: #{tpu_custom_call.1} parent=1 // pred_region
      %v664 = vld [vmem:[#allocation3] sm:$0xff]
      %v665 = vlog2.pop %v664
      %v666 = vmul.f32 %v665, 0.6931472
      %v667 = vld [vmem:[#allocation2] sm:$0xff]
      %v668 = vadd.f32 %v666, %v667
      %v669 = vld [vmem:[#allocation4] sm:$0xff]
      %v670 = vsub.f32 %v668, %v669
      %671 = vst.msk [vmem:[%s3] sm:$0xff] %vm655, %v670
    $region25: #{tpu_custom_call.1} parent=1 // pred_fallthru
      _
    // Predicated region
    $region26: #{tpu_custom_call.1} parent=1 // pred_check
      _
    $region27: #{tpu_custom_call.1} parent=1 // pred_check_branch
      %673 = sbr.rel (0) target = $region29
    $region28: #{tpu_custom_call.1} parent=1 // pred_region
      _
    $region29: #{tpu_custom_call.1} parent=1 // pred_fallthru
      _
    // Predicated region
    $region30: #{tpu_custom_call.1} parent=1 // pred_check
      _
    $region31: #{tpu_custom_call.1} parent=1 // pred_check_branch
      %675 = sbr.rel (0) target = $region33
    $region32: #{tpu_custom_call.1} parent=1 // pred_region
      _
    $region33: #{tpu_custom_call.1} parent=1 // pred_fallthru
      _
    %676 = vsyncpa [#allocation6], 1

</llo_original>
